<compile_context>
chip_gen: v6e
topology: v6e:2x2x1
jax: 0.10.0
libtpu: 0.0.40
codegen_flags: <defaults>
</compile_context>

<pallas_src>
import functools

import jax
import jax.numpy as jnp
from jax.experimental import pallas as pl
from jax.experimental.pallas import tpu as pltpu


# ----------------------------------------------------------------------------
# Pseudo-diagonal mask construction (init-time glue, plain JAX).
# TODO(synk): get_mask_pseudo_diagonal_numpy is not provided in the source file;
#   this is a deterministic pseudo-diagonal band mask with the same shape contract.
# ----------------------------------------------------------------------------
def pseudo_diagonal_mask(shape, diag_pos):
    rows, cols = shape
    r = jnp.arange(rows)[:, None]          # (rows, 1)
    c = jnp.arange(cols)[None, :]          # (1, cols)
    base = (r * cols) // rows
    mask = jnp.zeros(shape, dtype=jnp.float32)
    for off in diag_pos:
        mask = jnp.maximum(mask, (c == (base + off) % cols).astype(jnp.float32))
    return mask


# ----------------------------------------------------------------------------
# Pallas kernel: masked recurrent MLP forward.
#   x_ref   : (Bp, D)  bf16   (rows padded with zeros up to a multiple of 8)
#   w1t_ref : (D, H)   bf16   (pre-masked, pre-transposed recurrent weights)
#   b1_ref  : (1, H)   f32
#   w2t_ref : (H, Op)  bf16   (pre-transposed fc1 weights, lanes padded to 128)
#   b2_ref  : (1, Op)  f32    (lane-padded with zeros)
#   out_ref : (Bp, Op) f32
# ----------------------------------------------------------------------------
def mlp_kernel(x_ref, w1t_ref, b1_ref, w2t_ref, b2_ref, out_ref, *, num_layers):
    x0 = x_ref[...].astype(jnp.float32)                 # (Bp, D) residual, f32
    w1t = w1t_ref[...]                                  # (D, H)  bf16
    b1 = b1_ref[...]                                    # (1, H)  f32
    w2t = w2t_ref[...]                                  # (H, Op) bf16
    b2 = b2_ref[...]                                    # (1, Op) f32

    h = x0
    # num_layers is small and static -> unrolled Python loop (LLO visibility).
    # TODO(synk): switch to lax.fori_loop(..., unroll=True) if num_layers grows.
    for _ in range(num_layers):
        y = jnp.dot(h.astype(jnp.bfloat16), w1t,
                    preferred_element_type=jnp.float32) + b1
        h = jnp.maximum(y, 0.0) + x0                    # ReLU + residual (f32)

    out = jnp.dot(h.astype(jnp.bfloat16), w2t,
                  preferred_element_type=jnp.float32) + b2
    out_ref[...] = out.astype(out_ref.dtype)


def mlp_forward(x_nchw, w1, b1, mask1, w2, b2, *, num_layers):
    B = x_nchw.shape[0]
    x = x_nchw.reshape(B, -1)                           # (B, D) flatten (glue)
    D = x.shape[1]
    H = w1.shape[0]
    O = w2.shape[0]
    assert H == D, "residual x + identity requires hidden_dim == input_dim"

    SUB, LANE = 8, 128
    Bp = ((B + SUB - 1) // SUB) * SUB                   # sublane-aligned batch
    Op = ((O + LANE - 1) // LANE) * LANE                # lane-dense output

    # --- one-time (per-call, but static-shaped) layout plumbing ------------
    # Fold the static mask into W1 and pre-transpose both weights to (in, out).
    w1t = (w1 * mask1).T.astype(jnp.bfloat16)           # (D, H)
    w2t = jnp.zeros((H, Op), jnp.bfloat16).at[:, :O].set(w2.T.astype(jnp.bfloat16))
    b1_2d = b1.reshape(1, H).astype(jnp.float32)
    b2_2d = jnp.zeros((1, Op), jnp.float32).at[:, :O].set(b2.astype(jnp.float32))
    x_p = jnp.zeros((Bp, D), jnp.bfloat16).at[:B, :].set(x.astype(jnp.bfloat16))

    kernel = functools.partial(mlp_kernel, num_layers=num_layers)
    vmem_spec = pl.BlockSpec(memory_space=pltpu.MemorySpace.VMEM)

    flops = 2 * Bp * D * H * num_layers + 2 * Bp * H * Op
    bytes_accessed = (x_p.size * 2 + w1t.size * 2 + w2t.size * 2
                      + b1_2d.size * 4 + b2_2d.size * 4 + Bp * Op * 4)

    out_p = pl.pallas_call(
        kernel,
        out_shape=jax.ShapeDtypeStruct((Bp, Op), jnp.float32),
        in_specs=[vmem_spec] * 5,          # small problem: whole arrays in VMEM
        out_specs=vmem_spec,
        cost_estimate=pl.CostEstimate(flops=flops, transcendentals=0,
                                      bytes_accessed=bytes_accessed),
    )(x_p, w1t, b1_2d, w2t, b2_2d)

    return out_p[:B, :O]                                # strip padding


# ----------------------------------------------------------------------------
# Deterministic parameter construction (mimics nn.Linear init ranges).
# ----------------------------------------------------------------------------
def init_params(key, input_dim, hidden_dim, output_dim, diag_pos):
    k1, k2, k3, k4 = jax.random.split(key, 4)
    lim1 = 1.0 / jnp.sqrt(input_dim)
    lim2 = 1.0 / jnp.sqrt(hidden_dim)
    w1 = jax.random.uniform(k1, (hidden_dim, input_dim), jnp.float32, -lim1, lim1)
    b1 = jax.random.uniform(k2, (hidden_dim,), jnp.float32, -lim1, lim1)
    w2 = jax.random.uniform(k3, (output_dim, hidden_dim), jnp.float32, -lim2, lim2)
    b2 = jax.random.uniform(k4, (output_dim,), jnp.float32, -lim2, lim2)
    mask1 = pseudo_diagonal_mask((hidden_dim, input_dim), diag_pos)
    # mask2 is created in __init__ but never used in forward; omitted.
    return w1, b1, mask1, w2, b2


if __name__ == "__main__":
    # Small shapes consistent with the module's forward:
    #   x: NCHW (2, 2, 8, 8) -> flattened input_dim = 128 (lane-aligned)
    #   hidden_dim must equal input_dim (residual), output_dim = 10 (CIFAR-10 classes)
    B, C, Himg, Wimg = 2, 2, 8, 8
    input_dim = C * Himg * Wimg            # 128
    hidden_dim = input_dim                 # 128 (required by x + identity)
    output_dim = 10
    num_layers = 3
    diag_pos = [0, 3, 7]

    key = jax.random.PRNGKey(0)
    kx, kp = jax.random.split(key)
    x = jax.random.normal(kx, (B, C, Himg, Wimg), jnp.float32)

    w1, b1, mask1, w2, b2 = init_params(kp, input_dim, hidden_dim, output_dim, diag_pos)

    out = mlp_forward(x, w1, b1, mask1, w2, b2, num_layers=num_layers)
    out = jax.block_until_ready(out)

    # Reference check in plain JAX (same math / same bf16-MXU-f32-accum recipe).
    xf = x.reshape(B, -1)
    x0 = xf.astype(jnp.bfloat16).astype(jnp.float32)
    w1t_ref = (w1 * mask1).T.astype(jnp.bfloat16)
    w2t_ref = w2.T.astype(jnp.bfloat16)
    h = x0
    for _ in range(num_layers):
        y = jnp.dot(h.astype(jnp.bfloat16), w1t_ref,
                    preferred_element_type=jnp.float32) + b1
        h = jnp.maximum(y, 0.0) + x0
    ref = jnp.dot(h.astype(jnp.bfloat16), w2t_ref,
                  preferred_element_type=jnp.float32) + b2

    assert out.shape == (B, output_dim), f"bad output shape {out.shape}"
    assert jnp.allclose(out, ref, atol=1e-3, rtol=1e-3), "mismatch vs reference"

    print("KERNEL_OK")
</pallas_src>

<mosaic_0001>
module attributes {stable_mosaic.version = 11 : i64} {
  func.func @mlp_kernel(%arg0: memref<8x128xbf16, #tpu.memory_space<vmem>>, %arg1: memref<128x128xbf16, #tpu.memory_space<vmem>>, %arg2: memref<1x128xf32, #tpu.memory_space<vmem>>, %arg3: memref<128x128xbf16, #tpu.memory_space<vmem>>, %arg4: memref<1x128xf32, #tpu.memory_space<vmem>>, %arg5: memref<8x128xf32, #tpu.memory_space<vmem>>) attributes {dimension_semantics = [], scalar_prefetch = 0 : i64, scratch_operands = 0 : i64, tpu.core_type = #tpu.core_type<tc>} {
    %c0 = arith.constant 0 : index
    %c0_0 = arith.constant 0 : index
    %0 = vector.load %arg0[%c0, %c0_0] : memref<8x128xbf16, #tpu.memory_space<vmem>>, vector<8x128xbf16>
    %1 = arith.extf %0 : vector<8x128xbf16> to vector<8x128xf32>
    %c0_1 = arith.constant 0 : index
    %c0_2 = arith.constant 0 : index
    %2 = vector.load %arg1[%c0_1, %c0_2] : memref<128x128xbf16, #tpu.memory_space<vmem>>, vector<128x128xbf16>
    %c0_3 = arith.constant 0 : index
    %c0_4 = arith.constant 0 : index
    %3 = vector.load %arg2[%c0_3, %c0_4] : memref<1x128xf32, #tpu.memory_space<vmem>>, vector<1x128xf32>
    %c0_5 = arith.constant 0 : index
    %c0_6 = arith.constant 0 : index
    %4 = vector.load %arg3[%c0_5, %c0_6] : memref<128x128xbf16, #tpu.memory_space<vmem>>, vector<128x128xbf16>
    %c0_7 = arith.constant 0 : index
    %c0_8 = arith.constant 0 : index
    %5 = vector.load %arg4[%c0_7, %c0_8] : memref<1x128xf32, #tpu.memory_space<vmem>>, vector<1x128xf32>
    %6 = arith.truncf %1 : vector<8x128xf32> to vector<8x128xbf16>
    %cst = arith.constant dense<0.000000e+00> : vector<8x128xf32>
    %7 = tpu.matmul %6, %2, %cst {dimension_numbers = #tpu.dot_dimension_numbers<[1], [0], [0], [1], [0, 0, 1, 1], [], []>} : vector<8x128xbf16>, vector<128x128xbf16>, vector<8x128xf32> -> vector<8x128xf32>
    %8 = vector.broadcast %3 : vector<1x128xf32> to vector<8x128xf32>
    %9 = arith.addf %7, %8 : vector<8x128xf32>
    %cst_9 = arith.constant 0.000000e+00 : f32
    %10 = vector.broadcast %cst_9 : f32 to vector<8x128xf32>
    %11 = arith.maximumf %9, %10 : vector<8x128xf32>
    %12 = arith.addf %11, %1 : vector<8x128xf32>
    %13 = arith.truncf %12 : vector<8x128xf32> to vector<8x128xbf16>
    %cst_10 = arith.constant dense<0.000000e+00> : vector<8x128xf32>
    %14 = tpu.matmul %13, %2, %cst_10 {dimension_numbers = #tpu.dot_dimension_numbers<[1], [0], [0], [1], [0, 0, 1, 1], [], []>} : vector<8x128xbf16>, vector<128x128xbf16>, vector<8x128xf32> -> vector<8x128xf32>
    %15 = vector.broadcast %3 : vector<1x128xf32> to vector<8x128xf32>
    %16 = arith.addf %14, %15 : vector<8x128xf32>
    %cst_11 = arith.constant 0.000000e+00 : f32
    %17 = vector.broadcast %cst_11 : f32 to vector<8x128xf32>
    %18 = arith.maximumf %16, %17 : vector<8x128xf32>
    %19 = arith.addf %18, %1 : vector<8x128xf32>
    %20 = arith.truncf %19 : vector<8x128xf32> to vector<8x128xbf16>
    %cst_12 = arith.constant dense<0.000000e+00> : vector<8x128xf32>
    %21 = tpu.matmul %20, %2, %cst_12 {dimension_numbers = #tpu.dot_dimension_numbers<[1], [0], [0], [1], [0, 0, 1, 1], [], []>} : vector<8x128xbf16>, vector<128x128xbf16>, vector<8x128xf32> -> vector<8x128xf32>
    %22 = vector.broadcast %3 : vector<1x128xf32> to vector<8x128xf32>
    %23 = arith.addf %21, %22 : vector<8x128xf32>
    %cst_13 = arith.constant 0.000000e+00 : f32
    %24 = vector.broadcast %cst_13 : f32 to vector<8x128xf32>
    %25 = arith.maximumf %23, %24 : vector<8x128xf32>
    %26 = arith.addf %25, %1 : vector<8x128xf32>
    %27 = arith.truncf %26 : vector<8x128xf32> to vector<8x128xbf16>
    %cst_14 = arith.constant dense<0.000000e+00> : vector<8x128xf32>
    %28 = tpu.matmul %27, %4, %cst_14 {dimension_numbers = #tpu.dot_dimension_numbers<[1], [0], [0], [1], [0, 0, 1, 1], [], []>} : vector<8x128xbf16>, vector<128x128xbf16>, vector<8x128xf32> -> vector<8x128xf32>
    %29 = vector.broadcast %5 : vector<1x128xf32> to vector<8x128xf32>
    %30 = arith.addf %28, %29 : vector<8x128xf32>
    %c0_15 = arith.constant 0 : index
    %c0_16 = arith.constant 0 : index
    %31 = vector.load %arg5[%c0_15, %c0_16] : memref<8x128xf32, #tpu.memory_space<vmem>>, vector<8x128xf32>
    tpu.vector_store %arg5[%c0_15, %c0_16], %30 {strides = array<i32>} : memref<8x128xf32, #tpu.memory_space<vmem>>, vector<8x128xf32>,
    return
  }
}

</mosaic_0001>

<llo_original>
// kernel: tpu_custom_call.1
$region0: #{tpu_custom_call.1}
  #allocation0 [shape = 'u32[]', space=smem, size = 0x4, offset = 0x4, fixed_abs, tag = 'smem constant byte address 0x4 - core index']
  #allocation1 [shape = 'u32[144,128]{1,0:T(1,128)}', space=vmem, size = 0x12000, scoped, tag = 'internal scratch']
  %s0 = inlined_call_operand.hbm [shape: bf16[8,128], index: 0, kind: input, shape index: {}]
  %s1 = inlined_call_operand.hbm [shape: bf16[128,128], index: 1, kind: input, shape index: {}]
  %s2 = inlined_call_operand.vmem [shape: f32[1,128], index: 2, kind: input, shape index: {}]
  %s3 = inlined_call_operand.hbm [shape: bf16[128,128], index: 3, kind: input, shape index: {}]
  %s4 = inlined_call_operand.vmem [shape: f32[1,128], index: 4, kind: input, shape index: {}]
  %s5 = inlined_call_operand.hbm [shape: f32[8,128], index: 5, kind: output, shape index: {}]
  %s6 = sld [smem:[#allocation0]]
  $region42: #{tpu_custom_call.1} parent=0
    _
  %s8 = ssub.s32 1, %s6
  %s9 = scalar_select 0, %s8, %s6
  $region1: #{tpu_custom_call.1} parent=0
    #allocation2 [shape = 'u8[2048]{0}', space=vmem, size = 0x800, scoped, tag = 'input window, operand 0, single buffered']
    #allocation3 [shape = 's32[1]{0}', space=sflag, size = 0x4, scoped, tag = 'scoped memory for tpu_custom_call.1']
    #allocation4 [shape = 's32[1]{0}', space=sflag, size = 0x4, scoped, tag = 'scoped memory for tpu_custom_call.1']
    #allocation5 [shape = 'u8[32768]{0}', space=vmem, size = 0x8000, scoped, tag = 'input window, operand 1, single buffered']
    #allocation6 [shape = 's32[1]{0}', space=sflag, size = 0x4, scoped, tag = 'scoped memory for tpu_custom_call.1']
    #allocation7 [shape = 'u8[32768]{0}', space=vmem, size = 0x8000, scoped, tag = 'input window, operand 3, single buffered']
    #allocation8 [shape = 'u8[4096]{0}', space=vmem, size = 0x1000, scoped, tag = 'output window, operand 0, single buffered']
    %10 = vsyncpa [#allocation3], 0
    %11 = vsyncpa [#allocation6], 0
    %12 = vsyncpa [#allocation4], 0
    // Predicated region
    $region2: #{tpu_custom_call.1} parent=1 // pred_check
      _
    $region3: #{tpu_custom_call.1} parent=1 // pred_check_branch
      %14 = sbr.rel (0) target = $region5
    $region4: #{tpu_custom_call.1} parent=1 // pred_region
      %s16 = ssub.s32 64, 64
      %17 = vsyncadd [#allocation3], %s16
      %s19 = sshll.u32 [#allocation2], 4
      %s20 = int_to_ptr.vmem [resolvable:$true] %s19
      %22 = dma.hbm_to_vmem [thread:$0]  %s0, 64, %s20, [#allocation3]
    $region5: #{tpu_custom_call.1} parent=1 // pred_fallthru
      _
    // Predicated region
    $region6: #{tpu_custom_call.1} parent=1 // pred_check
      _
    $region7: #{tpu_custom_call.1} parent=1 // pred_check_branch
      %24 = sbr.rel (0) target = $region9
    $region8: #{tpu_custom_call.1} parent=1 // pred_region
      %s26 = ssub.s32 1024, 1024
      %27 = vsyncadd [#allocation6], %s26
      %s28 = sshll.u32 [#allocation5], 4
      %s29 = int_to_ptr.vmem [resolvable:$true] %s28
      %34 = dma.hbm_to_vmem [thread:$0]  %s1, 1024, %s29, [#allocation6], 64, 64, 4
    $region9: #{tpu_custom_call.1} parent=1 // pred_fallthru
      _
    // Predicated region
    $region10: #{tpu_custom_call.1} parent=1 // pred_check
      _
    $region11: #{tpu_custom_call.1} parent=1 // pred_check_branch
      %36 = sbr.rel (0) target = $region13
    $region12: #{tpu_custom_call.1} parent=1 // pred_region
      _
    $region13: #{tpu_custom_call.1} parent=1 // pred_fallthru
      _
    // Predicated region
    $region14: #{tpu_custom_call.1} parent=1 // pred_check
      _
    $region15: #{tpu_custom_call.1} parent=1 // pred_check_branch
      %38 = sbr.rel (0) target = $region17
    $region16: #{tpu_custom_call.1} parent=1 // pred_region
      %s40 = ssub.s32 1024, 1024
      %41 = vsyncadd [#allocation6], %s40
      %s42 = sshll.u32 [#allocation7], 4
      %s43 = int_to_ptr.vmem [resolvable:$true] %s42
      %48 = dma.hbm_to_vmem [thread:$0]  %s3, 1024, %s43, [#allocation6], 64, 64, 4
    $region17: #{tpu_custom_call.1} parent=1 // pred_fallthru
      _
    // Predicated region
    $region18: #{tpu_custom_call.1} parent=1 // pred_check
      _
    $region19: #{tpu_custom_call.1} parent=1 // pred_check_branch
      %50 = sbr.rel (0) target = $region21
    $region20: #{tpu_custom_call.1} parent=1 // pred_region
      _
    $region21: #{tpu_custom_call.1} parent=1 // pred_fallthru
      _
    // Predicated region
    $region22: #{tpu_custom_call.1} parent=1 // pred_check
      _
    $region23: #{tpu_custom_call.1} parent=1 // pred_check_branch
      %52 = sbr.rel (0) target = $region25
    $region24: #{tpu_custom_call.1} parent=1 // pred_region
      %53 = dma.done [#allocation3], 64
    $region25: #{tpu_custom_call.1} parent=1 // pred_fallthru
      _
    // Predicated region
    $region26: #{tpu_custom_call.1} parent=1 // pred_check
      _
    $region27: #{tpu_custom_call.1} parent=1 // pred_check_branch
      %55 = sbr.rel (0) target = $region29
    $region28: #{tpu_custom_call.1} parent=1 // pred_region
      %56 = dma.done [#allocation6], 1024
    $region29: #{tpu_custom_call.1} parent=1 // pred_fallthru
      _
    // Predicated region
    $region30: #{tpu_custom_call.1} parent=1 // pred_check
      _
    $region31: #{tpu_custom_call.1} parent=1 // pred_check_branch
      %58 = sbr.rel (0) target = $region33
    $region32: #{tpu_custom_call.1} parent=1 // pred_region
      %59 = dma.done [#allocation6], 1024
    $region33: #{tpu_custom_call.1} parent=1 // pred_fallthru
      _
    %v61 = vld [vmem:[#allocation2] sm:$0xf]
    %v62 = vunpack.c.l.bf16 %v61
    %v63 = vld [vmem:[#allocation5] sm:$0xf]
    %v64 = vld [vmem:[#allocation5 + $0x4] sm:$0xf]
    %v65 = vld [vmem:[#allocation5 + $0x8] sm:$0xf]
    %v66 = vld [vmem:[#allocation5 + $0xc] sm:$0xf]
    %v67 = vld [vmem:[#allocation5 + $0x10] sm:$0xf]
    %v68 = vld [vmem:[#allocation5 + $0x14] sm:$0xf]
    %v69 = vld [vmem:[#allocation5 + $0x18] sm:$0xf]
    %v70 = vld [vmem:[#allocation5 + $0x1c] sm:$0xf]
    %v71 = vld [vmem:[#allocation5 + $0x20] sm:$0xf]
    %v72 = vld [vmem:[#allocation5 + $0x24] sm:$0xf]
    %v73 = vld [vmem:[#allocation5 + $0x28] sm:$0xf]
    %v74 = vld [vmem:[#allocation5 + $0x2c] sm:$0xf]
    %v75 = vld [vmem:[#allocation5 + $0x30] sm:$0xf]
    %v76 = vld [vmem:[#allocation5 + $0x34] sm:$0xf]
    %v77 = vld [vmem:[#allocation5 + $0x38] sm:$0xf]
    %v78 = vld [vmem:[#allocation5 + $0x3c] sm:$0xf]
    %v79 = vld [vmem:[%s2] sm:$0x1]
    %v80 = vld [vmem:[#allocation7] sm:$0xf]
    %v81 = vld [vmem:[#allocation7 + $0x4] sm:$0xf]
    %v82 = vld [vmem:[#allocation7 + $0x8] sm:$0xf]
    %v83 = vld [vmem:[#allocation7 + $0xc] sm:$0xf]
    %v84 = vld [vmem:[#allocation7 + $0x10] sm:$0xf]
    %v85 = vld [vmem:[#allocation7 + $0x14] sm:$0xf]
    %v86 = vld [vmem:[#allocation7 + $0x18] sm:$0xf]
    %v87 = vld [vmem:[#allocation7 + $0x1c] sm:$0xf]
    %v88 = vld [vmem:[#allocation7 + $0x20] sm:$0xf]
    %v89 = vld [vmem:[#allocation7 + $0x24] sm:$0xf]
    %v90 = vld [vmem:[#allocation7 + $0x28] sm:$0xf]
    %v91 = vld [vmem:[#allocation7 + $0x2c] sm:$0xf]
    %v92 = vld [vmem:[#allocation7 + $0x30] sm:$0xf]
    %v93 = vld [vmem:[#allocation7 + $0x34] sm:$0xf]
    %v94 = vld [vmem:[#allocation7 + $0x38] sm:$0xf]
    %v95 = vld [vmem:[#allocation7 + $0x3c] sm:$0xf]
    %v96 = vld [vmem:[%s4] sm:$0x1]
    %v98 = vlaneseq
    %v99 = vshrl.u32 %v98, 7
    %v100 = vsub.s32 0, %v99
    %v101 = vrot.slane %v79, %v100
    %v119 = vunpack.c.l.b16 %v63
    %v120 = vunpack.c.l.b16 %v64
    %v121 = vunpack.c.l.b16 %v65
    %v122 = vunpack.c.l.b16 %v66
    %v123 = vunpack.c.l.b16 %v67
    %v124 = vunpack.c.l.b16 %v68
    %v125 = vunpack.c.l.b16 %v69
    %v126 = vunpack.c.l.b16 %v70
    %v127 = vunpack.c.l.b16 %v71
    %v128 = vunpack.c.l.b16 %v72
    %v129 = vunpack.c.l.b16 %v73
    %v130 = vunpack.c.l.b16 %v74
    %v131 = vunpack.c.l.b16 %v75
    %v132 = vunpack.c.l.b16 %v76
    %v133 = vunpack.c.l.b16 %v77
    %v134 = vunpack.c.l.b16 %v78
    %v135 = vpack.c.b16 %v120, %v119
    %v136 = vpack.c.b16 %v122, %v121
    %v137 = vpack.c.b16 %v124, %v123
    %v138 = vpack.c.b16 %v126, %v125
    %v139 = vpack.c.b16 %v128, %v127
    %v140 = vpack.c.b16 %v130, %v129
    %v141 = vpack.c.b16 %v132, %v131
    %v142 = vpack.c.b16 %v134, %v133
    %151 = vmatprep.subr.bf16.mxu0 0
    %152 = vmatpush1.bf16.msra.mxu0 %v142
    %153 = vmatprep.subr.bf16.mxu0 0
    %154 = vmatpush1.bf16.msra.mxu0 %v141
    %155 = vmatprep.subr.bf16.mxu0 0
    %156 = vmatpush1.bf16.msra.mxu0 %v140
    %157 = vmatprep.subr.bf16.mxu0 0
    %158 = vmatpush1.bf16.msra.mxu0 %v139
    %159 = vmatprep.subr.bf16.mxu0 0
    %160 = vmatpush1.bf16.msra.mxu0 %v138
    %161 = vmatprep.subr.bf16.mxu0 0
    %162 = vmatpush1.bf16.msra.mxu0 %v137
    %163 = vmatprep.subr.bf16.mxu0 0
    %164 = vmatpush1.bf16.msra.mxu0 %v136
    %165 = vmatprep.subr.bf16.mxu0 0
    %166 = vmatpush1.bf16.msra.mxu0 %v135
    %167 = vmatprep.subr.bf16.mxu0 0
    %168 = vmatpush2.bf16.msra.mxu0 0
    %169 = vmatprep.subr.bf16.mxu0 0
    %170 = vmatpush2.bf16.msra.mxu0 0
    %171 = vmatprep.subr.bf16.mxu0 0
    %172 = vmatpush2.bf16.msra.mxu0 0
    %173 = vmatprep.subr.bf16.mxu0 0
    %174 = vmatpush2.bf16.msra.mxu0 0
    %175 = vmatprep.subr.bf16.mxu0 0
    %176 = vmatpush2.bf16.msra.mxu0 0
    %177 = vmatprep.subr.bf16.mxu0 0
    %178 = vmatpush2.bf16.msra.mxu0 0
    %179 = vmatprep.subr.bf16.mxu0 0
    %180 = vmatpush2.bf16.msra.mxu0 0
    %181 = vmatprep.subr.bf16.mxu0 0
    %182 = vmatpush2.bf16.msra.mxu0 0
    %183 = vmatprep.mubr.bf16.mxu0 0
    %184 = vmatmul.mubr.bf16.gmra.mxu0 %v61
    %v185 = vpop.f32.mrf.mxu0
    %v186 = vadd.f32 %v101, %v185
    %v187 = vpop.f32.mrf.mxu0
    %v188 = vpop.f32.mrf.mxu0
    %v189 = vpop.f32.mrf.mxu0
    %190 = vdwg.mxu0
    %v191 = vmax.f32 %v186, 0.0
    %v192 = vadd.f32 %v191, %v62
    %v193 = vpack.c.bf16 %v192, %v192
    %194 = vmatprep.subr.bf16.mxu0 0
    %195 = vmatpush1.bf16.msra.mxu0 %v142
    %196 = vmatprep.subr.bf16.mxu0 0
    %197 = vmatpush1.bf16.msra.mxu0 %v141
    %198 = vmatprep.subr.bf16.mxu0 0
    %199 = vmatpush1.bf16.msra.mxu0 %v140
    %200 = vmatprep.subr.bf16.mxu0 0
    %201 = vmatpush1.bf16.msra.mxu0 %v139
    %202 = vmatprep.subr.bf16.mxu0 0
    %203 = vmatpush1.bf16.msra.mxu0 %v138
    %204 = vmatprep.subr.bf16.mxu0 0
    %205 = vmatpush1.bf16.msra.mxu0 %v137
    %206 = vmatprep.subr.bf16.mxu0 0
    %207 = vmatpush1.bf16.msra.mxu0 %v136
    %208 = vmatprep.subr.bf16.mxu0 0
    %209 = vmatpush1.bf16.msra.mxu0 %v135
    %210 = vmatprep.subr.bf16.mxu0 0
    %211 = vmatpush2.bf16.msra.mxu0 0
    %212 = vmatprep.subr.bf16.mxu0 0
    %213 = vmatpush2.bf16.msra.mxu0 0
    %214 = vmatprep.subr.bf16.mxu0 0
    %215 = vmatpush2.bf16.msra.mxu0 0
    %216 = vmatprep.subr.bf16.mxu0 0
    %217 = vmatpush2.bf16.msra.mxu0 0
    %218 = vmatprep.subr.bf16.mxu0 0
    %219 = vmatpush2.bf16.msra.mxu0 0
    %220 = vmatprep.subr.bf16.mxu0 0
    %221 = vmatpush2.bf16.msra.mxu0 0
    %222 = vmatprep.subr.bf16.mxu0 0
    %223 = vmatpush2.bf16.msra.mxu0 0
    %224 = vmatprep.subr.bf16.mxu0 0
    %225 = vmatpush2.bf16.msra.mxu0 0
    %226 = vmatprep.mubr.bf16.mxu0 0
    %227 = vmatmul.mubr.bf16.gmra.mxu0 %v193
    %v228 = vpop.f32.mrf.mxu0
    %v229 = vadd.f32 %v101, %v228
    %v230 = vpop.f32.mrf.mxu0
    %v231 = vpop.f32.mrf.mxu0
    %v232 = vpop.f32.mrf.mxu0
    %233 = vdwg.mxu0
    %v234 = vmax.f32 %v229, 0.0
    %v235 = vadd.f32 %v234, %v62
    %v236 = vpack.c.bf16 %v235, %v235
    %237 = vmatprep.subr.bf16.mxu0 0
    %238 = vmatpush1.bf16.msra.mxu0 %v142
    %239 = vmatprep.subr.bf16.mxu0 0
    %240 = vmatpush1.bf16.msra.mxu0 %v141
    %241 = vmatprep.subr.bf16.mxu0 0
    %242 = vmatpush1.bf16.msra.mxu0 %v140
    %243 = vmatprep.subr.bf16.mxu0 0
    %244 = vmatpush1.bf16.msra.mxu0 %v139
    %245 = vmatprep.subr.bf16.mxu0 0
    %246 = vmatpush1.bf16.msra.mxu0 %v138
    %247 = vmatprep.subr.bf16.mxu0 0
    %248 = vmatpush1.bf16.msra.mxu0 %v137
    %249 = vmatprep.subr.bf16.mxu0 0
    %250 = vmatpush1.bf16.msra.mxu0 %v136
    %251 = vmatprep.subr.bf16.mxu0 0
    %252 = vmatpush1.bf16.msra.mxu0 %v135
    %253 = vmatprep.subr.bf16.mxu0 0
    %254 = vmatpush2.bf16.msra.mxu0 0
    %255 = vmatprep.subr.bf16.mxu0 0
    %256 = vmatpush2.bf16.msra.mxu0 0
    %257 = vmatprep.subr.bf16.mxu0 0
    %258 = vmatpush2.bf16.msra.mxu0 0
    %259 = vmatprep.subr.bf16.mxu0 0
    %260 = vmatpush2.bf16.msra.mxu0 0
    %261 = vmatprep.subr.bf16.mxu0 0
    %262 = vmatpush2.bf16.msra.mxu0 0
    %263 = vmatprep.subr.bf16.mxu0 0
    %264 = vmatpush2.bf16.msra.mxu0 0
    %265 = vmatprep.subr.bf16.mxu0 0
    %266 = vmatpush2.bf16.msra.mxu0 0
    %267 = vmatprep.subr.bf16.mxu0 0
    %268 = vmatpush2.bf16.msra.mxu0 0
    %269 = vmatprep.mubr.bf16.mxu0 0
    %270 = vmatmul.mubr.bf16.gmra.mxu0 %v236
    %v271 = vpop.f32.mrf.mxu0
    %v272 = vadd.f32 %v101, %v271
    %v273 = vpop.f32.mrf.mxu0
    %v274 = vpop.f32.mrf.mxu0
    %v275 = vpop.f32.mrf.mxu0
    %276 = vdwg.mxu0
    %v277 = vmax.f32 %v272, 0.0
    %v278 = vadd.f32 %v277, %v62
    %v279 = vpack.c.bf16 %v278, %v278
    %v281 = vlaneseq
    %v282 = vshrl.u32 %v281, 7
    %v283 = vsub.s32 0, %v282
    %v284 = vrot.slane %v96, %v283
    %v302 = vunpack.c.l.b16 %v80
    %v303 = vunpack.c.l.b16 %v81
    %v304 = vunpack.c.l.b16 %v82
    %v305 = vunpack.c.l.b16 %v83
    %v306 = vunpack.c.l.b16 %v84
    %v307 = vunpack.c.l.b16 %v85
    %v308 = vunpack.c.l.b16 %v86
    %v309 = vunpack.c.l.b16 %v87
    %v310 = vunpack.c.l.b16 %v88
    %v311 = vunpack.c.l.b16 %v89
    %v312 = vunpack.c.l.b16 %v90
    %v313 = vunpack.c.l.b16 %v91
    %v314 = vunpack.c.l.b16 %v92
    %v315 = vunpack.c.l.b16 %v93
    %v316 = vunpack.c.l.b16 %v94
    %v317 = vunpack.c.l.b16 %v95
    %v318 = vpack.c.b16 %v303, %v302
    %v319 = vpack.c.b16 %v305, %v304
    %v320 = vpack.c.b16 %v307, %v306
    %v321 = vpack.c.b16 %v309, %v308
    %v322 = vpack.c.b16 %v311, %v310
    %v323 = vpack.c.b16 %v313, %v312
    %v324 = vpack.c.b16 %v315, %v314
    %v325 = vpack.c.b16 %v317, %v316
    %334 = vmatprep.subr.bf16.mxu0 0
    %335 = vmatpush1.bf16.msra.mxu0 %v325
    %336 = vmatprep.subr.bf16.mxu0 0
    %337 = vmatpush1.bf16.msra.mxu0 %v324
    %338 = vmatprep.subr.bf16.mxu0 0
    %339 = vmatpush1.bf16.msra.mxu0 %v323
    %340 = vmatprep.subr.bf16.mxu0 0
    %341 = vmatpush1.bf16.msra.mxu0 %v322
    %342 = vmatprep.subr.bf16.mxu0 0
    %343 = vmatpush1.bf16.msra.mxu0 %v321
    %344 = vmatprep.subr.bf16.mxu0 0
    %345 = vmatpush1.bf16.msra.mxu0 %v320
    %346 = vmatprep.subr.bf16.mxu0 0
    %347 = vmatpush1.bf16.msra.mxu0 %v319
    %348 = vmatprep.subr.bf16.mxu0 0
    %349 = vmatpush1.bf16.msra.mxu0 %v318
    %350 = vmatprep.subr.bf16.mxu0 0
    %351 = vmatpush2.bf16.msra.mxu0 0
    %352 = vmatprep.subr.bf16.mxu0 0
    %353 = vmatpush2.bf16.msra.mxu0 0
    %354 = vmatprep.subr.bf16.mxu0 0
    %355 = vmatpush2.bf16.msra.mxu0 0
    %356 = vmatprep.subr.bf16.mxu0 0
    %357 = vmatpush2.bf16.msra.mxu0 0
    %358 = vmatprep.subr.bf16.mxu0 0
    %359 = vmatpush2.bf16.msra.mxu0 0
    %360 = vmatprep.subr.bf16.mxu0 0
    %361 = vmatpush2.bf16.msra.mxu0 0
    %362 = vmatprep.subr.bf16.mxu0 0
    %363 = vmatpush2.bf16.msra.mxu0 0
    %364 = vmatprep.subr.bf16.mxu0 0
    %365 = vmatpush2.bf16.msra.mxu0 0
    %366 = vmatprep.mubr.bf16.mxu0 0
    %367 = vmatmul.mubr.bf16.gmra.mxu0 %v279
    %v368 = vpop.f32.mrf.mxu0
    %v369 = vadd.f32 %v284, %v368
    %v370 = vpop.f32.mrf.mxu0
    %v371 = vpop.f32.mrf.mxu0
    %v372 = vpop.f32.mrf.mxu0
    %373 = vdwg.mxu0
    %374 = vst [vmem:[#allocation8] sm:$0xff] %v369
    // Predicated region
    $region34: #{tpu_custom_call.1} parent=1 // pred_check
      _
    $region35: #{tpu_custom_call.1} parent=1 // pred_check_branch
      %376 = sbr.rel (0) target = $region37
    $region36: #{tpu_custom_call.1} parent=1 // pred_region
      %s378 = ssub.s32 128, 128
      %379 = vsyncadd [#allocation4], %s378
      %s381 = sshll.u32 [#allocation8], 4
      %s382 = int_to_ptr.vmem [resolvable:$true] %s381
      %384 = dma.vmem_to_hbm [thread:$0]  %s382, 128, %s5, [#allocation4]
    $region37: #{tpu_custom_call.1} parent=1 // pred_fallthru
      _
    // Predicated region
    $region38: #{tpu_custom_call.1} parent=1 // pred_check
      _
    $region39: #{tpu_custom_call.1} parent=1 // pred_check_branch
      %386 = sbr.rel (0) target = $region41
    $region40: #{tpu_custom_call.1} parent=1 // pred_region
      %387 = dma.done [#allocation4], 128
    $region41: #{tpu_custom_call.1} parent=1 // pred_fallthru
      _
    %388 = vsyncpa [#allocation3], 1
    %389 = vsyncpa [#allocation6], 1
    %390 = vsyncpa [#allocation4], 1

</llo_original>
